<compile_context>
chip_gen: v7x
topology: tpu7x:2x2x1
jax: 0.10.0
libtpu: 0.0.40
codegen_flags: <defaults>
</compile_context>

<pallas_src>
import functools

import jax
import jax.numpy as jnp
from jax import lax
from jax.experimental import pallas as pl
from jax.experimental.pallas import tpu as pltpu


def _round_up(x, m):
    return (x + m - 1) // m * m


def _padded_bytes(rows, cols, itemsize):
    """VMEM footprint of a (rows, cols) tile after (8, 128) layout padding."""
    return _round_up(max(rows, 1), 8) * _round_up(max(cols, 1), 128) * itemsize


def _vmem_capacity_bytes():
    """Per-TensorCore physical VMEM; conservative fallback = 64 MiB (v7x per-TC)."""
    try:
        info = pltpu.get_tpu_info()
        cap = getattr(info, "vmem_capacity_bytes", None)
        if cap:
            return int(cap)
    except Exception:
        pass
    return 64 * 1024 * 1024


# --------------------- primary path: MXU one-hot gather (small vocab) ---------------------

def _gmf_onehot_kernel(user_ids_ref, item_ids_ref, user_tab_ref, item_tab_ref, out_ref):
    """One grid step: gather tb user/item rows via one-hot MXU matmuls and store
    the elementwise product as one dense (tb, E) block.

    user_ids_ref / item_ids_ref : (tb, 1) int32 blocks in VMEM.
    user_tab_ref / item_tab_ref : full embedding tables, VMEM-resident.
    out_ref                     : (tb, E) output block in VMEM.
    """
    tb = out_ref.shape[0]
    nu = user_tab_ref.shape[0]
    ni = item_tab_ref.shape[0]

    u_ids = user_ids_ref[...]                                    # (tb, 1) int32
    i_ids = item_ids_ref[...]

    u_oh = (lax.broadcasted_iota(jnp.int32, (tb, nu), 1) == u_ids).astype(user_tab_ref.dtype)
    i_oh = (lax.broadcasted_iota(jnp.int32, (tb, ni), 1) == i_ids).astype(item_tab_ref.dtype)

    u_emb = jnp.dot(u_oh, user_tab_ref[...],
                    preferred_element_type=jnp.float32, precision=lax.Precision.HIGHEST)
    i_emb = jnp.dot(i_oh, item_tab_ref[...],
                    preferred_element_type=jnp.float32, precision=lax.Precision.HIGHEST)

    # Product in f32, single dense block store.
    out_ref[...] = (u_emb * i_emb).astype(out_ref.dtype)


# --------------------- fallback path: scalar gather loop (large vocab) --------------------

def _gmf_gather_kernel(tb, user_ids_ref, item_ids_ref, user_tab_ref, item_tab_ref, out_ref):
    """Scalar-indexed gather fallback: ids live in SMEM (scalar prefetch); products
    are built 8 rows at a time and stored as sublane-dense (8, E) blocks."""
    base = pl.program_id(0) * tb

    def body(g, carry):
        r0 = pl.multiple_of(g * 8, 8)
        rows = []
        for r in range(8):                                       # static -> fully unrolled
            u = user_ids_ref[base + r0 + r]                      # scalar SMEM reads
            v = item_ids_ref[base + r0 + r]
            rows.append(user_tab_ref[pl.ds(u, 1), :].astype(jnp.float32) *
                        item_tab_ref[pl.ds(v, 1), :].astype(jnp.float32))
        out_ref[pl.ds(r0, 8), :] = jnp.concatenate(rows, axis=0).astype(out_ref.dtype)
        return carry

    lax.fori_loop(0, tb // 8, body, 0, unroll=2)


# ------------------------------------- wrapper --------------------------------------------

def gmf_forward(user_idx, item_idx, user_table, item_table, *,
                max_rows_per_step=1024, onehot_vocab_limit=2048):
    """GMF forward: gather user/item embeddings and multiply elementwise.

    Args:
      user_idx:   (B,) integer user indices.
      item_idx:   (B,) integer item indices.
      user_table: (num_users, E) embedding table.
      item_table: (num_items, E) embedding table.

    Returns:
      (B, E) elementwise product of the gathered embeddings.
    """
    B = user_idx.shape[0]
    num_users, E = user_table.shape
    num_items, E2 = item_table.shape
    assert E == E2, "user/item embedding sizes must match"
    assert user_table.dtype == item_table.dtype, "table dtypes must match"
    assert max_rows_per_step >= 8 and max_rows_per_step % 8 == 0

    out_dtype = user_table.dtype
    itemsize = jnp.dtype(out_dtype).itemsize

    # Pad vocab dims to sublane multiples (padded rows are never selected).
    nu_pad = _round_up(num_users, 8)
    ni_pad = _round_up(num_items, 8)
    if nu_pad != num_users:
        user_table = jnp.pad(user_table, ((0, nu_pad - num_users), (0, 0)))
    if ni_pad != num_items:
        item_table = jnp.pad(item_table, ((0, ni_pad - num_items), (0, 0)))

    # Clamp indices defensively: in-kernel dynamic VMEM access has no bounds check
    # (nn.Embedding would raise on OOB; valid inputs are unaffected).
    user_idx = jnp.clip(user_idx.astype(jnp.int32), 0, num_users - 1)
    item_idx = jnp.clip(item_idx.astype(jnp.int32), 0, num_items - 1)

    # Large batch tile per grid step (multiple of 8); pad batch to a multiple of tb.
    tb = min(max_rows_per_step, _round_up(B, 8))
    b_pad = _round_up(B, tb)
    if b_pad != B:
        pad = b_pad - B
        user_idx = jnp.pad(user_idx, (0, pad))
        item_idx = jnp.pad(item_idx, (0, pad))
    grid = (b_pad // tb,)

    use_onehot = max(num_users, num_items) <= onehot_vocab_limit

    # ----- chip-aware VMEM budgeting -----
    vmem_cap = _vmem_capacity_bytes()
    table_vmem = _padded_bytes(nu_pad, E, itemsize) + _padded_bytes(ni_pad, E, itemsize)
    out_vmem = 2 * _padded_bytes(tb, E, itemsize)                 # double-buffered output block
    if use_onehot:
        ids_vmem = 2 * 2 * _padded_bytes(tb, 1, 4)                # (tb,1) int32, double-buffered
        tmp_vmem = (2 * _padded_bytes(tb, max(nu_pad, ni_pad), 4) # one-hot temporaries
                    + 2 * _padded_bytes(tb, E, 4))                # f32 gathered tiles
    else:
        ids_vmem = 0                                              # ids live in SMEM
        tmp_vmem = 16 * _padded_bytes(8, E, 4)
    needed = table_vmem + out_vmem + ids_vmem + tmp_vmem + (8 << 20)  # + headroom

    # Keep both tables VMEM-resident only while they fit in half the per-core VMEM
    # (on v7x, megacore sharding replicates them into each TensorCore's 64 MiB).
    assert table_vmem <= vmem_cap // 2, (
        "embedding tables too large for the VMEM-resident path")
    # TODO(synk): for tables exceeding the VMEM budget, switch to a manual
    # double-buffered HBM row gather (memory_space=pl.ANY + pltpu.make_async_copy).
    assert needed <= int(0.9 * vmem_cap), "per-step working set exceeds VMEM"
    vmem_limit = int(min(max(needed, 16 << 20), int(0.9 * vmem_cap)))

    compiler_params = pltpu.CompilerParams(
        dimension_semantics=("parallel",),      # batch tiles are independent
        vmem_limit_bytes=vmem_limit,            # explicit (v5e default scoped = 16 MiB)
    )
    io_bytes = int(table_vmem + b_pad * E * itemsize + 2 * b_pad * 4)

    if use_onehot:
        cost = pl.CostEstimate(
            flops=int(2 * b_pad * E * (nu_pad + ni_pad) + b_pad * E),
            transcendentals=0, bytes_accessed=io_bytes)
        grid_spec = pltpu.PrefetchScalarGridSpec(
            num_scalar_prefetch=0,
            grid=grid,
            in_specs=[
                pl.BlockSpec((tb, 1), lambda b: (b, 0)),                    # user ids block
                pl.BlockSpec((tb, 1), lambda b: (b, 0)),                    # item ids block
                pl.BlockSpec(memory_space=pltpu.MemorySpace.VMEM),          # user table resident
                pl.BlockSpec(memory_space=pltpu.MemorySpace.VMEM),          # item table resident
            ],
            out_specs=pl.BlockSpec((tb, E), lambda b: (b, 0)),
        )
        out = pl.pallas_call(
            _gmf_onehot_kernel,
            out_shape=jax.ShapeDtypeStruct((b_pad, E), out_dtype),
            grid_spec=grid_spec,
            compiler_params=compiler_params,
            cost_estimate=cost,
        )(user_idx.reshape(b_pad, 1), item_idx.reshape(b_pad, 1),
          user_table, item_table)
    else:
        cost = pl.CostEstimate(flops=int(b_pad * E), transcendentals=0,
                               bytes_accessed=io_bytes)
        grid_spec = pltpu.PrefetchScalarGridSpec(
            num_scalar_prefetch=2,              # user_idx, item_idx -> SMEM
            grid=grid,
            in_specs=[
                pl.BlockSpec(memory_space=pltpu.MemorySpace.VMEM),          # user table resident
                pl.BlockSpec(memory_space=pltpu.MemorySpace.VMEM),          # item table resident
            ],
            out_specs=pl.BlockSpec((tb, E), lambda b, uids, iids: (b, 0)),
        )
        out = pl.pallas_call(
            functools.partial(_gmf_gather_kernel, tb),
            out_shape=jax.ShapeDtypeStruct((b_pad, E), out_dtype),
            grid_spec=grid_spec,
            compiler_params=compiler_params,
            cost_estimate=cost,
        )(user_idx, item_idx, user_table, item_table)

    return out[:B] if b_pad != B else out


if __name__ == "__main__":
    # Small, deterministic synthetic setup consistent with GMF.__init__.
    num_users = 32
    num_items = 48
    embed_size = 64

    key = jax.random.PRNGKey(0)
    k_user, k_item, k_uidx, k_iidx = jax.random.split(key, 4)

    # Deterministic "parameters" (nn.Embedding weights) built in-script.
    user_table = jax.random.normal(k_user, (num_users, embed_size), dtype=jnp.float32)
    item_table = jax.random.normal(k_item, (num_items, embed_size), dtype=jnp.float32)

    # Case 1: small batch (single grid step), one-hot MXU gather path.
    batch = 8
    user_idx = jax.random.randint(k_uidx, (batch,), 0, num_users, dtype=jnp.int32)
    item_idx = jax.random.randint(k_iidx, (batch,), 0, num_items, dtype=jnp.int32)
    out = jax.block_until_ready(gmf_forward(user_idx, item_idx, user_table, item_table))
    ref = user_table[user_idx] * item_table[item_idx]
    assert out.shape == (batch, embed_size)
    assert jnp.allclose(out, ref, atol=1e-5, rtol=1e-4)

    # Case 2: larger, non-multiple-of-8 batch (exercises padding), one-hot path.
    batch2 = 200
    k_u2, k_i2 = jax.random.split(k_uidx)
    u2 = jax.random.randint(k_u2, (batch2,), 0, num_users, dtype=jnp.int32)
    i2 = jax.random.randint(k_i2, (batch2,), 0, num_items, dtype=jnp.int32)
    out2 = jax.block_until_ready(gmf_forward(u2, i2, user_table, item_table))
    ref2 = user_table[u2] * item_table[i2]
    assert out2.shape == (batch2, embed_size)
    assert jnp.allclose(out2, ref2, atol=1e-5, rtol=1e-4)

    # Case 3: force the large-vocabulary scalar-gather fallback path.
    out3 = jax.block_until_ready(
        gmf_forward(u2, i2, user_table, item_table, onehot_vocab_limit=0))
    assert jnp.allclose(out3, ref2, atol=1e-6, rtol=1e-6)

    print("KERNEL_OK")
</pallas_src>

<mosaic_0001>
module attributes {stable_mosaic.version = 11 : i64} {
  func.func @_gmf_onehot_kernel(%arg0: i32, %arg1: memref<8x1xi32, #tpu.memory_space<vmem>>, %arg2: memref<8x1xi32, #tpu.memory_space<vmem>>, %arg3: memref<32x64xf32, #tpu.memory_space<vmem>>, %arg4: memref<48x64xf32, #tpu.memory_space<vmem>>, %arg5: memref<8x64xf32, #tpu.memory_space<vmem>>) attributes {dimension_semantics = [#tpu.dimension_semantics<parallel>], iteration_bounds = array<i64: 1>, scalar_prefetch = 0 : i64, scratch_operands = 0 : i64, tpu.core_type = #tpu.core_type<tc>, window_params = [{transform_indices = @transform_0, window_bounds = array<i64: 8, 1>}, {transform_indices = @transform_1, window_bounds = array<i64: 8, 1>}, {pipeline_mode = #tpu.pipeline_mode<synchronous>, transform_indices = @transform_2, window_bounds = array<i64: 32, 64>}, {pipeline_mode = #tpu.pipeline_mode<synchronous>, transform_indices = @transform_3, window_bounds = array<i64: 48, 64>}, {transform_indices = @transform_4, window_bounds = array<i64: 8, 64>}]} {
    %c0 = arith.constant 0 : index
    %c0_0 = arith.constant 0 : index
    %0 = vector.load %arg1[%c0, %c0_0] : memref<8x1xi32, #tpu.memory_space<vmem>>, vector<8x1xi32>
    %c0_1 = arith.constant 0 : index
    %c0_2 = arith.constant 0 : index
    %1 = vector.load %arg2[%c0_1, %c0_2] : memref<8x1xi32, #tpu.memory_space<vmem>>, vector<8x1xi32>
    %2 = tpu.iota {dimensions = array<i32: 1>} : vector<8x32xi32>
    %3 = vector.broadcast %0 : vector<8x1xi32> to vector<8x32xi32>
    %4 = arith.cmpi eq, %2, %3 : vector<8x32xi32>
    %5 = arith.extui %4 : vector<8x32xi1> to vector<8x32xi32>
    %6 = arith.sitofp %5 : vector<8x32xi32> to vector<8x32xf32>
    %7 = tpu.iota {dimensions = array<i32: 1>} : vector<8x48xi32>
    %8 = vector.broadcast %1 : vector<8x1xi32> to vector<8x48xi32>
    %9 = arith.cmpi eq, %7, %8 : vector<8x48xi32>
    %10 = arith.extui %9 : vector<8x48xi1> to vector<8x48xi32>
    %11 = arith.sitofp %10 : vector<8x48xi32> to vector<8x48xf32>
    %c0_3 = arith.constant 0 : index
    %c0_4 = arith.constant 0 : index
    %12 = vector.load %arg3[%c0_3, %c0_4] : memref<32x64xf32, #tpu.memory_space<vmem>>, vector<32x64xf32>
    %cst = arith.constant dense<0.000000e+00> : vector<8x64xf32>
    %13 = tpu.matmul %6, %12, %cst {dimension_numbers = #tpu.dot_dimension_numbers<[1], [0], [0], [1], [0, 0, 1, 1], [], []>, precision = #tpu.contract_precision<fp32>} : vector<8x32xf32>, vector<32x64xf32>, vector<8x64xf32> -> vector<8x64xf32>
    %c0_5 = arith.constant 0 : index
    %c0_6 = arith.constant 0 : index
    %14 = vector.load %arg4[%c0_5, %c0_6] : memref<48x64xf32, #tpu.memory_space<vmem>>, vector<48x64xf32>
    %cst_7 = arith.constant dense<0.000000e+00> : vector<8x64xf32>
    %15 = tpu.matmul %11, %14, %cst_7 {dimension_numbers = #tpu.dot_dimension_numbers<[1], [0], [0], [1], [0, 0, 1, 1], [], []>, precision = #tpu.contract_precision<fp32>} : vector<8x48xf32>, vector<48x64xf32>, vector<8x64xf32> -> vector<8x64xf32>
    %16 = arith.mulf %13, %15 : vector<8x64xf32>
    %c0_8 = arith.constant 0 : index
    %c0_9 = arith.constant 0 : index
    %17 = vector.load %arg5[%c0_8, %c0_9] : memref<8x64xf32, #tpu.memory_space<vmem>>, vector<8x64xf32>
    tpu.vector_store %arg5[%c0_8, %c0_9], %16 {strides = array<i32>} : memref<8x64xf32, #tpu.memory_space<vmem>>, vector<8x64xf32>,
    return
  }
  func.func @transform_0(%arg0: i32) -> (i32, i32) {
    %c0_i32 = arith.constant 0 : i32
    %c0_i32_0 = arith.constant 0 : i32
    return %arg0, %c0_i32 : i32, i32
  }
  func.func @transform_1(%arg0: i32) -> (i32, i32) {
    %c0_i32 = arith.constant 0 : i32
    %c0_i32_0 = arith.constant 0 : i32
    return %arg0, %c0_i32 : i32, i32
  }
  func.func @transform_2(%arg0: i32) -> (i32, i32) {
    %c0_i32 = arith.constant 0 : i32
    %c0_i32_0 = arith.constant 0 : i32
    %c0_i32_1 = arith.constant 0 : i32
    return %c0_i32, %c0_i32_0 : i32, i32
  }
  func.func @transform_3(%arg0: i32) -> (i32, i32) {
    %c0_i32 = arith.constant 0 : i32
    %c0_i32_0 = arith.constant 0 : i32
    %c0_i32_1 = arith.constant 0 : i32
    return %c0_i32, %c0_i32_0 : i32, i32
  }
  func.func @transform_4(%arg0: i32) -> (i32, i32) {
    %c0_i32 = arith.constant 0 : i32
    %c0_i32_0 = arith.constant 0 : i32
    return %arg0, %c0_i32 : i32, i32
  }
}

</mosaic_0001>

<llo_original>
// kernel: tpu_custom_call.1
$region0: #{tpu_custom_call.1}
  #allocation0 [shape = 'u32[]', space=smem, size = 0x4, offset = 0x4, fixed_abs, tag = 'smem constant byte address 0x4 - core index']
  #allocation1 [shape = 'u32[144,128]{1,0:T(1,128)}', space=vmem, size = 0x12000, scoped, tag = 'internal scratch']
  %s0 = inlined_call_operand.vmem [shape: s32[8,1], index: 0, kind: input, shape index: {}]
  %s1 = inlined_call_operand.vmem [shape: s32[8,1], index: 1, kind: input, shape index: {}]
  %s2 = inlined_call_operand.hbm [shape: f32[32,64], index: 2, kind: input, shape index: {}]
  %s3 = inlined_call_operand.hbm [shape: f32[48,64], index: 3, kind: input, shape index: {}]
  %s4 = inlined_call_operand.hbm [shape: f32[8,64], index: 4, kind: output, shape index: {}]
  %s5 = sld [smem:[#allocation0]]
  $region34: #{tpu_custom_call.1} parent=0
    _
  %s7 = ssub.s32 1, %s5
  %s8 = scalar_select 0, %s7, %s5
  $region1: #{tpu_custom_call.1} parent=0
    #allocation2 [shape = 'u8[16384]{0}', space=vmem, size = 0x4000, scoped, tag = 'input window, operand 2, single buffered']
    #allocation3 [shape = 's32[1]{0}', space=sflag, size = 0x4, scoped, tag = 'scoped memory for tpu_custom_call.1']
    #allocation4 [shape = 's32[1]{0}', space=sflag, size = 0x4, scoped, tag = 'scoped memory for tpu_custom_call.1']
    #allocation5 [shape = 'u8[24576]{0}', space=vmem, size = 0x6000, scoped, tag = 'input window, operand 3, single buffered']
    #allocation6 [shape = 's32[1]{0}', space=sflag, size = 0x4, scoped, tag = 'scoped memory for tpu_custom_call.1']
    #allocation7 [shape = 'u8[4096]{0}', space=vmem, size = 0x1000, scoped, tag = 'output window, operand 0, single buffered']
    %9 = vsyncpa [#allocation3], 0
    %10 = vsyncpa [#allocation6], 0
    %11 = vsyncpa [#allocation4], 0
    // Predicated region
    $region2: #{tpu_custom_call.1} parent=1 // pred_check
      _
    $region3: #{tpu_custom_call.1} parent=1 // pred_check_branch
      %13 = sbr.rel (0) target = $region5
    $region4: #{tpu_custom_call.1} parent=1 // pred_region
      _
    $region5: #{tpu_custom_call.1} parent=1 // pred_fallthru
      _
    // Predicated region
    $region6: #{tpu_custom_call.1} parent=1 // pred_check
      _
    $region7: #{tpu_custom_call.1} parent=1 // pred_check_branch
      %15 = sbr.rel (0) target = $region9
    $region8: #{tpu_custom_call.1} parent=1 // pred_region
      _
    $region9: #{tpu_custom_call.1} parent=1 // pred_fallthru
      _
    // Predicated region
    $region10: #{tpu_custom_call.1} parent=1 // pred_check
      _
    $region11: #{tpu_custom_call.1} parent=1 // pred_check_branch
      %17 = sbr.rel (0) target = $region13
    $region12: #{tpu_custom_call.1} parent=1 // pred_region
      %s19 = ssub.s32 512, 512
      %20 = vsyncadd [#allocation3], %s19
      %s21 = sshll.u32 [#allocation2], 4
      %s22 = int_to_ptr.vmem [resolvable:$true] %s21
      %27 = dma.hbm_to_vmem [thread:$0]  %s2, 512, %s22, [#allocation3], 128, 128, 8
    $region13: #{tpu_custom_call.1} parent=1 // pred_fallthru
      _
    // Predicated region
    $region14: #{tpu_custom_call.1} parent=1 // pred_check
      _
    $region15: #{tpu_custom_call.1} parent=1 // pred_check_branch
      %29 = sbr.rel (0) target = $region17
    $region16: #{tpu_custom_call.1} parent=1 // pred_region
      %s31 = ssub.s32 768, 768
      %32 = vsyncadd [#allocation6], %s31
      %s33 = sshll.u32 [#allocation5], 4
      %s34 = int_to_ptr.vmem [resolvable:$true] %s33
      %39 = dma.hbm_to_vmem [thread:$0]  %s3, 768, %s34, [#allocation6], 128, 128, 8
    $region17: #{tpu_custom_call.1} parent=1 // pred_fallthru
      _
    // Predicated region
    $region18: #{tpu_custom_call.1} parent=1 // pred_check
      _
    $region19: #{tpu_custom_call.1} parent=1 // pred_check_branch
      %41 = sbr.rel (0) target = $region21
    $region20: #{tpu_custom_call.1} parent=1 // pred_region
      %42 = dma.done [#allocation3], 512
    $region21: #{tpu_custom_call.1} parent=1 // pred_fallthru
      _
    // Predicated region
    $region22: #{tpu_custom_call.1} parent=1 // pred_check
      _
    $region23: #{tpu_custom_call.1} parent=1 // pred_check_branch
      %44 = sbr.rel (0) target = $region25
    $region24: #{tpu_custom_call.1} parent=1 // pred_region
      %45 = dma.done [#allocation6], 768
    $region25: #{tpu_custom_call.1} parent=1 // pred_fallthru
      _
    %v46 = vld [vmem:[%s0] sm:$0xff]
    %v47 = vld [vmem:[%s1] sm:$0xff]
    %v48 = vlaneseq
    %v49 = vand.u32 %v48, 127
    %50 = vset.pattern.permute.xlu0 0
    %51 = vperm.xlu0 %50, %v46
    %v52 = vpop.permute.xlu0 %51
    %vm53 = vcmp.eq.s32.totalorder %v49, %v52
    %v54 = vsel %vm53, 1, 0
    %v55 = vcvt.s32.f32 %v54
    %56 = vset.pattern.permute.xlu0 0
    %57 = vperm.xlu0 %56, %v47
    %v58 = vpop.permute.xlu0 %57
    %vm59 = vcmp.eq.s32.totalorder %v49, %v58
    %v60 = vsel %vm59, 1, 0
    %v61 = vcvt.s32.f32 %v60
    %v62 = vld [vmem:[#allocation2] sm:$0xff]
    %v63 = vld [vmem:[#allocation2 + $0x8] sm:$0xff]
    %v64 = vld [vmem:[#allocation2 + $0x10] sm:$0xff]
    %v65 = vld [vmem:[#allocation2 + $0x18] sm:$0xff]
    %vm66 = vcmask 261120
    %v68 = vsel %vm66, %v55, 0
    %70 = vmatprep.subr.mxu0 0.0
    %v71 = vand.u32 %v62, 4294901760
    %72 = vmatpush1.msra.mxu0 %v71
    %73 = vmatprep.subr.mxu0 0.0
    %v74 = vand.u32 %v63, 4294901760
    %75 = vmatpush1.msra.mxu0 %v74
    %76 = vmatprep.subr.mxu0 0.0
    %v77 = vand.u32 %v64, 4294901760
    %78 = vmatpush1.msra.mxu0 %v77
    %79 = vmatprep.subr.mxu0 0.0
    %v80 = vand.u32 %v65, 4294901760
    %81 = vmatpush1.msra.mxu0 %v80
    %82 = vmatprep.subr.mxu0 0.0
    %83 = vmatpush1.msra.mxu0 0.0
    %84 = vmatprep.subr.mxu0 0.0
    %85 = vmatpush1.msra.mxu0 0.0
    %86 = vmatprep.subr.mxu0 0.0
    %87 = vmatpush1.msra.mxu0 0.0
    %88 = vmatprep.subr.mxu0 0.0
    %89 = vmatpush1.msra.mxu0 0.0
    %90 = vmatprep.subr.mxu0 0.0
    %91 = vmatpush1.msra.mxu0 0.0
    %92 = vmatprep.subr.mxu0 0.0
    %93 = vmatpush1.msra.mxu0 0.0
    %94 = vmatprep.subr.mxu0 0.0
    %95 = vmatpush1.msra.mxu0 0.0
    %96 = vmatprep.subr.mxu0 0.0
    %97 = vmatpush1.msra.mxu0 0.0
    %98 = vmatprep.subr.mxu0 0.0
    %99 = vmatpush1.msra.mxu0 0.0
    %100 = vmatprep.subr.mxu0 0.0
    %101 = vmatpush1.msra.mxu0 0.0
    %102 = vmatprep.subr.mxu0 0.0
    %103 = vmatpush1.msra.mxu0 0.0
    %104 = vmatprep.subr.mxu0 0.0
    %105 = vmatpush1.msra.mxu0 0.0
    %106 = vmatprep.subr.mxu0 0.0
    %107 = vmatpush1.msra.mxu0 0.0
    %108 = vmatprep.subr.mxu0 0.0
    %109 = vmatpush1.msra.mxu0 0.0
    %110 = vmatprep.subr.mxu0 0.0
    %111 = vmatpush1.msra.mxu0 0.0
    %112 = vmatprep.subr.mxu0 0.0
    %113 = vmatpush1.msra.mxu0 0.0
    %114 = vmatprep.subr.mxu0 0.0
    %115 = vmatpush1.msra.mxu0 0.0
    %116 = vmatprep.subr.mxu0 0.0
    %117 = vmatpush1.msra.mxu0 0.0
    %118 = vmatprep.subr.mxu0 0.0
    %119 = vmatpush1.msra.mxu0 0.0
    %120 = vmatprep.subr.mxu0 0.0
    %121 = vmatpush1.msra.mxu0 0.0
    %122 = vmatprep.subr.mxu0 0.0
    %123 = vmatpush1.msra.mxu0 0.0
    %124 = vmatprep.subr.mxu0 0.0
    %125 = vmatpush1.msra.mxu0 0.0
    %126 = vmatprep.subr.mxu0 0.0
    %127 = vmatpush1.msra.mxu0 0.0
    %128 = vmatprep.subr.mxu0 0.0
    %129 = vmatpush1.msra.mxu0 0.0
    %130 = vmatprep.subr.mxu0 0.0
    %131 = vmatpush1.msra.mxu0 0.0
    %132 = vmatprep.subr.mxu0 0.0
    %133 = vmatpush1.msra.mxu0 0.0
    %134 = vmatprep.subr.mxu0 0.0
    %135 = vmatpush1.msra.mxu0 0.0
    %136 = vmatprep.subr.mxu0 0.0
    %137 = vmatpush1.msra.mxu0 0.0
    %138 = vmatprep.mubr.f32.mxu0 0.0
    %v139 = vand.u32 %v68, 4294901760
    %v140 = vsub.f32 %v68, %v139
    %v141 = vand.u32 %v140, 4294901760
    %v142 = vsub.f32 %v140, %v141
    %v143 = vand.u32 %v142, 4294901760
    %144 = vmatmul.mubr.f32.gmra.mrb[0].mxu0 %v143
    %v145 = vpop.f32.mrb[0].mxu0
    %v146 = vadd.f32 0.0, %v145
    %v147 = vpop.f32.mrb[0].mxu0
    %148 = vdwg.mxu0
    %149 = vmatprep.subr.mxu0 0.0
    %v150 = vand.u32 %v62, 4294901760
    %v151 = vsub.f32 %v62, %v150
    %v152 = vand.u32 %v151, 4294901760
    %v153 = vsub.f32 %v151, %v152
    %v154 = vand.u32 %v153, 4294901760
    %155 = vmatpush1.msra.mxu0 %v154
    %156 = vmatprep.subr.mxu0 0.0
    %v157 = vand.u32 %v63, 4294901760
    %v158 = vsub.f32 %v63, %v157
    %v159 = vand.u32 %v158, 4294901760
    %v160 = vsub.f32 %v158, %v159
    %v161 = vand.u32 %v160, 4294901760
    %162 = vmatpush1.msra.mxu0 %v161
    %163 = vmatprep.subr.mxu0 0.0
    %v164 = vand.u32 %v64, 4294901760
    %v165 = vsub.f32 %v64, %v164
    %v166 = vand.u32 %v165, 4294901760
    %v167 = vsub.f32 %v165, %v166
    %v168 = vand.u32 %v167, 4294901760
    %169 = vmatpush1.msra.mxu0 %v168
    %170 = vmatprep.subr.mxu0 0.0
    %v171 = vand.u32 %v65, 4294901760
    %v172 = vsub.f32 %v65, %v171
    %v173 = vand.u32 %v172, 4294901760
    %v174 = vsub.f32 %v172, %v173
    %v175 = vand.u32 %v174, 4294901760
    %176 = vmatpush1.msra.mxu0 %v175
    %177 = vmatprep.subr.mxu0 0.0
    %178 = vmatpush1.msra.mxu0 0.0
    %179 = vmatprep.subr.mxu0 0.0
    %180 = vmatpush1.msra.mxu0 0.0
    %181 = vmatprep.subr.mxu0 0.0
    %182 = vmatpush1.msra.mxu0 0.0
    %183 = vmatprep.subr.mxu0 0.0
    %184 = vmatpush1.msra.mxu0 0.0
    %185 = vmatprep.subr.mxu0 0.0
    %186 = vmatpush1.msra.mxu0 0.0
    %187 = vmatprep.subr.mxu0 0.0
    %188 = vmatpush1.msra.mxu0 0.0
    %189 = vmatprep.subr.mxu0 0.0
    %190 = vmatpush1.msra.mxu0 0.0
    %191 = vmatprep.subr.mxu0 0.0
    %192 = vmatpush1.msra.mxu0 0.0
    %193 = vmatprep.subr.mxu0 0.0
    %194 = vmatpush1.msra.mxu0 0.0
    %195 = vmatprep.subr.mxu0 0.0
    %196 = vmatpush1.msra.mxu0 0.0
    %197 = vmatprep.subr.mxu0 0.0
    %198 = vmatpush1.msra.mxu0 0.0
    %199 = vmatprep.subr.mxu0 0.0
    %200 = vmatpush1.msra.mxu0 0.0
    %201 = vmatprep.subr.mxu0 0.0
    %202 = vmatpush1.msra.mxu0 0.0
    %203 = vmatprep.subr.mxu0 0.0
    %204 = vmatpush1.msra.mxu0 0.0
    %205 = vmatprep.subr.mxu0 0.0
    %206 = vmatpush1.msra.mxu0 0.0
    %207 = vmatprep.subr.mxu0 0.0
    %208 = vmatpush1.msra.mxu0 0.0
    %209 = vmatprep.subr.mxu0 0.0
    %210 = vmatpush1.msra.mxu0 0.0
    %211 = vmatprep.subr.mxu0 0.0
    %212 = vmatpush1.msra.mxu0 0.0
    %213 = vmatprep.subr.mxu0 0.0
    %214 = vmatpush1.msra.mxu0 0.0
    %215 = vmatprep.subr.mxu0 0.0
    %216 = vmatpush1.msra.mxu0 0.0
    %217 = vmatprep.subr.mxu0 0.0
    %218 = vmatpush1.msra.mxu0 0.0
    %219 = vmatprep.subr.mxu0 0.0
    %220 = vmatpush1.msra.mxu0 0.0
    %221 = vmatprep.subr.mxu0 0.0
    %222 = vmatpush1.msra.mxu0 0.0
    %223 = vmatprep.subr.mxu0 0.0
    %224 = vmatpush1.msra.mxu0 0.0
    %225 = vmatprep.subr.mxu0 0.0
    %226 = vmatpush1.msra.mxu0 0.0
    %227 = vmatprep.subr.mxu0 0.0
    %228 = vmatpush1.msra.mxu0 0.0
    %229 = vmatprep.subr.mxu0 0.0
    %230 = vmatpush1.msra.mxu0 0.0
    %231 = vmatprep.subr.mxu0 0.0
    %232 = vmatpush1.msra.mxu0 0.0
    %233 = vmatprep.mubr.f32.mxu0 0.0
    %v234 = vand.u32 %v68, 4294901760
    %235 = vmatmul.mubr.f32.gmra.mrb[0].mxu0 %v234
    %v236 = vpop.f32.mrb[0].mxu0
    %v237 = vadd.f32 %v146, %v236
    %v238 = vpop.f32.mrb[0].mxu0
    %239 = vdwg.mxu0
    %240 = vmatprep.subr.mxu0 0.0
    %v241 = vand.u32 %v62, 4294901760
    %v242 = vsub.f32 %v62, %v241
    %243 = vmatpush1.msra.mxu0 %v242
    %244 = vmatprep.subr.mxu0 0.0
    %v245 = vand.u32 %v63, 4294901760
    %v246 = vsub.f32 %v63, %v245
    %247 = vmatpush1.msra.mxu0 %v246
    %248 = vmatprep.subr.mxu0 0.0
    %v249 = vand.u32 %v64, 4294901760
    %v250 = vsub.f32 %v64, %v249
    %251 = vmatpush1.msra.mxu0 %v250
    %252 = vmatprep.subr.mxu0 0.0
    %v253 = vand.u32 %v65, 4294901760
    %v254 = vsub.f32 %v65, %v253
    %255 = vmatpush1.msra.mxu0 %v254
    %256 = vmatprep.subr.mxu0 0.0
    %257 = vmatpush1.msra.mxu0 0.0
    %258 = vmatprep.subr.mxu0 0.0
    %259 = vmatpush1.msra.mxu0 0.0
    %260 = vmatprep.subr.mxu0 0.0
    %261 = vmatpush1.msra.mxu0 0.0
    %262 = vmatprep.subr.mxu0 0.0
    %263 = vmatpush1.msra.mxu0 0.0
    %264 = vmatprep.subr.mxu0 0.0
    %265 = vmatpush1.msra.mxu0 0.0
    %266 = vmatprep.subr.mxu0 0.0
    %267 = vmatpush1.msra.mxu0 0.0
    %268 = vmatprep.subr.mxu0 0.0
    %269 = vmatpush1.msra.mxu0 0.0
    %270 = vmatprep.subr.mxu0 0.0
    %271 = vmatpush1.msra.mxu0 0.0
    %272 = vmatprep.subr.mxu0 0.0
    %273 = vmatpush1.msra.mxu0 0.0
    %274 = vmatprep.subr.mxu0 0.0
    %275 = vmatpush1.msra.mxu0 0.0
    %276 = vmatprep.subr.mxu0 0.0
    %277 = vmatpush1.msra.mxu0 0.0
    %278 = vmatprep.subr.mxu0 0.0
    %279 = vmatpush1.msra.mxu0 0.0
    %280 = vmatprep.subr.mxu0 0.0
    %281 = vmatpush1.msra.mxu0 0.0
    %282 = vmatprep.subr.mxu0 0.0
    %283 = vmatpush1.msra.mxu0 0.0
    %284 = vmatprep.subr.mxu0 0.0
    %285 = vmatpush1.msra.mxu0 0.0
    %286 = vmatprep.subr.mxu0 0.0
    %287 = vmatpush1.msra.mxu0 0.0
    %288 = vmatprep.subr.mxu0 0.0
    %289 = vmatpush1.msra.mxu0 0.0
    %290 = vmatprep.subr.mxu0 0.0
    %291 = vmatpush1.msra.mxu0 0.0
    %292 = vmatprep.subr.mxu0 0.0
    %293 = vmatpush1.msra.mxu0 0.0
    %294 = vmatprep.subr.mxu0 0.0
    %295 = vmatpush1.msra.mxu0 0.0
    %296 = vmatprep.subr.mxu0 0.0
    %297 = vmatpush1.msra.mxu0 0.0
    %298 = vmatprep.subr.mxu0 0.0
    %299 = vmatpush1.msra.mxu0 0.0
    %300 = vmatprep.subr.mxu0 0.0
    %301 = vmatpush1.msra.mxu0 0.0
    %302 = vmatprep.subr.mxu0 0.0
    %303 = vmatpush1.msra.mxu0 0.0
    %304 = vmatprep.subr.mxu0 0.0
    %305 = vmatpush1.msra.mxu0 0.0
    %306 = vmatprep.subr.mxu0 0.0
    %307 = vmatpush1.msra.mxu0 0.0
    %308 = vmatprep.subr.mxu0 0.0
    %309 = vmatpush1.msra.mxu0 0.0
    %310 = vmatprep.subr.mxu0 0.0
    %311 = vmatpush1.msra.mxu0 0.0
    %312 = vmatprep.mubr.f32.mxu0 0.0
    %v313 = vand.u32 %v68, 4294901760
    %v314 = vsub.f32 %v68, %v313
    %315 = vmatmul.mubr.f32.gmra.mrb[0].mxu0 %v314
    %v316 = vpop.f32.mrb[0].mxu0
    %v317 = vadd.f32 %v237, %v316
    %v318 = vpop.f32.mrb[0].mxu0
    %319 = vdwg.mxu0
    %320 = vmatprep.subr.mxu0 0.0
    %v321 = vand.u32 %v62, 4294901760
    %322 = vmatpush1.msra.mxu0 %v321
    %323 = vmatprep.subr.mxu0 0.0
    %v324 = vand.u32 %v63, 4294901760
    %325 = vmatpush1.msra.mxu0 %v324
    %326 = vmatprep.subr.mxu0 0.0
    %v327 = vand.u32 %v64, 4294901760
    %328 = vmatpush1.msra.mxu0 %v327
    %329 = vmatprep.subr.mxu0 0.0
    %v330 = vand.u32 %v65, 4294901760
    %331 = vmatpush1.msra.mxu0 %v330
    %332 = vmatprep.subr.mxu0 0.0
    %333 = vmatpush1.msra.mxu0 0.0
    %334 = vmatprep.subr.mxu0 0.0
    %335 = vmatpush1.msra.mxu0 0.0
    %336 = vmatprep.subr.mxu0 0.0
    %337 = vmatpush1.msra.mxu0 0.0
    %338 = vmatprep.subr.mxu0 0.0
    %339 = vmatpush1.msra.mxu0 0.0
    %340 = vmatprep.subr.mxu0 0.0
    %341 = vmatpush1.msra.mxu0 0.0
    %342 = vmatprep.subr.mxu0 0.0
    %343 = vmatpush1.msra.mxu0 0.0
    %344 = vmatprep.subr.mxu0 0.0
    %345 = vmatpush1.msra.mxu0 0.0
    %346 = vmatprep.subr.mxu0 0.0
    %347 = vmatpush1.msra.mxu0 0.0
    %348 = vmatprep.subr.mxu0 0.0
    %349 = vmatpush1.msra.mxu0 0.0
    %350 = vmatprep.subr.mxu0 0.0
    %351 = vmatpush1.msra.mxu0 0.0
    %352 = vmatprep.subr.mxu0 0.0
    %353 = vmatpush1.msra.mxu0 0.0
    %354 = vmatprep.subr.mxu0 0.0
    %355 = vmatpush1.msra.mxu0 0.0
    %356 = vmatprep.subr.mxu0 0.0
    %357 = vmatpush1.msra.mxu0 0.0
    %358 = vmatprep.subr.mxu0 0.0
    %359 = vmatpush1.msra.mxu0 0.0
    %360 = vmatprep.subr.mxu0 0.0
    %361 = vmatpush1.msra.mxu0 0.0
    %362 = vmatprep.subr.mxu0 0.0
    %363 = vmatpush1.msra.mxu0 0.0
    %364 = vmatprep.subr.mxu0 0.0
    %365 = vmatpush1.msra.mxu0 0.0
    %366 = vmatprep.subr.mxu0 0.0
    %367 = vmatpush1.msra.mxu0 0.0
    %368 = vmatprep.subr.mxu0 0.0
    %369 = vmatpush1.msra.mxu0 0.0
    %370 = vmatprep.subr.mxu0 0.0
    %371 = vmatpush1.msra.mxu0 0.0
    %372 = vmatprep.subr.mxu0 0.0
    %373 = vmatpush1.msra.mxu0 0.0
    %374 = vmatprep.subr.mxu0 0.0
    %375 = vmatpush1.msra.mxu0 0.0
    %376 = vmatprep.subr.mxu0 0.0
    %377 = vmatpush1.msra.mxu0 0.0
    %378 = vmatprep.subr.mxu0 0.0
    %379 = vmatpush1.msra.mxu0 0.0
    %380 = vmatprep.subr.mxu0 0.0
    %381 = vmatpush1.msra.mxu0 0.0
    %382 = vmatprep.subr.mxu0 0.0
    %383 = vmatpush1.msra.mxu0 0.0
    %384 = vmatprep.subr.mxu0 0.0
    %385 = vmatpush1.msra.mxu0 0.0
    %386 = vmatprep.subr.mxu0 0.0
    %387 = vmatpush1.msra.mxu0 0.0
    %388 = vmatprep.mubr.f32.mxu0 0.0
    %v389 = vand.u32 %v68, 4294901760
    %v390 = vsub.f32 %v68, %v389
    %v391 = vand.u32 %v390, 4294901760
    %392 = vmatmul.mubr.f32.gmra.mrb[0].mxu0 %v391
    %v393 = vpop.f32.mrb[0].mxu0
    %v394 = vadd.f32 %v317, %v393
    %v395 = vpop.f32.mrb[0].mxu0
    %396 = vdwg.mxu0
    %397 = vmatprep.subr.mxu0 0.0
    %v398 = vand.u32 %v62, 4294901760
    %v399 = vsub.f32 %v62, %v398
    %v400 = vand.u32 %v399, 4294901760
    %401 = vmatpush1.msra.mxu0 %v400
    %402 = vmatprep.subr.mxu0 0.0
    %v403 = vand.u32 %v63, 4294901760
    %v404 = vsub.f32 %v63, %v403
    %v405 = vand.u32 %v404, 4294901760
    %406 = vmatpush1.msra.mxu0 %v405
    %407 = vmatprep.subr.mxu0 0.0
    %v408 = vand.u32 %v64, 4294901760
    %v409 = vsub.f32 %v64, %v408
    %v410 = vand.u32 %v409, 4294901760
    %411 = vmatpush1.msra.mxu0 %v410
    %412 = vmatprep.subr.mxu0 0.0
    %v413 = vand.u32 %v65, 4294901760
    %v414 = vsub.f32 %v65, %v413
    %v415 = vand.u32 %v414, 4294901760
    %416 = vmatpush1.msra.mxu0 %v415
    %417 = vmatprep.subr.mxu0 0.0
    %418 = vmatpush1.msra.mxu0 0.0
    %419 = vmatprep.subr.mxu0 0.0
    %420 = vmatpush1.msra.mxu0 0.0
    %421 = vmatprep.subr.mxu0 0.0
    %422 = vmatpush1.msra.mxu0 0.0
    %423 = vmatprep.subr.mxu0 0.0
    %424 = vmatpush1.msra.mxu0 0.0
    %425 = vmatprep.subr.mxu0 0.0
    %426 = vmatpush1.msra.mxu0 0.0
    %427 = vmatprep.subr.mxu0 0.0
    %428 = vmatpush1.msra.mxu0 0.0
    %429 = vmatprep.subr.mxu0 0.0
    %430 = vmatpush1.msra.mxu0 0.0
    %431 = vmatprep.subr.mxu0 0.0
    %432 = vmatpush1.msra.mxu0 0.0
    %433 = vmatprep.subr.mxu0 0.0
    %434 = vmatpush1.msra.mxu0 0.0
    %435 = vmatprep.subr.mxu0 0.0
    %436 = vmatpush1.msra.mxu0 0.0
    %437 = vmatprep.subr.mxu0 0.0
    %438 = vmatpush1.msra.mxu0 0.0
    %439 = vmatprep.subr.mxu0 0.0
    %440 = vmatpush1.msra.mxu0 0.0
    %441 = vmatprep.subr.mxu0 0.0
    %442 = vmatpush1.msra.mxu0 0.0
    %443 = vmatprep.subr.mxu0 0.0
    %444 = vmatpush1.msra.mxu0 0.0
    %445 = vmatprep.subr.mxu0 0.0
    %446 = vmatpush1.msra.mxu0 0.0
    %447 = vmatprep.subr.mxu0 0.0
    %448 = vmatpush1.msra.mxu0 0.0
    %449 = vmatprep.subr.mxu0 0.0
    %450 = vmatpush1.msra.mxu0 0.0
    %451 = vmatprep.subr.mxu0 0.0
    %452 = vmatpush1.msra.mxu0 0.0
    %453 = vmatprep.subr.mxu0 0.0
    %454 = vmatpush1.msra.mxu0 0.0
    %455 = vmatprep.subr.mxu0 0.0
    %456 = vmatpush1.msra.mxu0 0.0
    %457 = vmatprep.subr.mxu0 0.0
    %458 = vmatpush1.msra.mxu0 0.0
    %459 = vmatprep.subr.mxu0 0.0
    %460 = vmatpush1.msra.mxu0 0.0
    %461 = vmatprep.subr.mxu0 0.0
    %462 = vmatpush1.msra.mxu0 0.0
    %463 = vmatprep.subr.mxu0 0.0
    %464 = vmatpush1.msra.mxu0 0.0
    %465 = vmatprep.subr.mxu0 0.0
    %466 = vmatpush1.msra.mxu0 0.0
    %467 = vmatprep.subr.mxu0 0.0
    %468 = vmatpush1.msra.mxu0 0.0
    %469 = vmatprep.subr.mxu0 0.0
    %470 = vmatpush1.msra.mxu0 0.0
    %471 = vmatprep.subr.mxu0 0.0
    %472 = vmatpush1.msra.mxu0 0.0
    %473 = vmatprep.mubr.f32.mxu0 0.0
    %v474 = vand.u32 %v68, 4294901760
    %475 = vmatmul.mubr.f32.gmra.mrb[0].mxu0 %v474
    %v476 = vpop.f32.mrb[0].mxu0
    %v477 = vadd.f32 %v394, %v476
    %v478 = vpop.f32.mrb[0].mxu0
    %479 = vdwg.mxu0
    %480 = vmatprep.subr.mxu0 0.0
    %v481 = vand.u32 %v62, 4294901760
    %482 = vmatpush1.msra.mxu0 %v481
    %483 = vmatprep.subr.mxu0 0.0
    %v484 = vand.u32 %v63, 4294901760
    %485 = vmatpush1.msra.mxu0 %v484
    %486 = vmatprep.subr.mxu0 0.0
    %v487 = vand.u32 %v64, 4294901760
    %488 = vmatpush1.msra.mxu0 %v487
    %489 = vmatprep.subr.mxu0 0.0
    %v490 = vand.u32 %v65, 4294901760
    %491 = vmatpush1.msra.mxu0 %v490
    %492 = vmatprep.subr.mxu0 0.0
    %493 = vmatpush1.msra.mxu0 0.0
    %494 = vmatprep.subr.mxu0 0.0
    %495 = vmatpush1.msra.mxu0 0.0
    %496 = vmatprep.subr.mxu0 0.0
    %497 = vmatpush1.msra.mxu0 0.0
    %498 = vmatprep.subr.mxu0 0.0
    %499 = vmatpush1.msra.mxu0 0.0
    %500 = vmatprep.subr.mxu0 0.0
    %501 = vmatpush1.msra.mxu0 0.0
    %502 = vmatprep.subr.mxu0 0.0
    %503 = vmatpush1.msra.mxu0 0.0
    %504 = vmatprep.subr.mxu0 0.0
    %505 = vmatpush1.msra.mxu0 0.0
    %506 = vmatprep.subr.mxu0 0.0
    %507 = vmatpush1.msra.mxu0 0.0
    %508 = vmatprep.subr.mxu0 0.0
    %509 = vmatpush1.msra.mxu0 0.0
    %510 = vmatprep.subr.mxu0 0.0
    %511 = vmatpush1.msra.mxu0 0.0
    %512 = vmatprep.subr.mxu0 0.0
    %513 = vmatpush1.msra.mxu0 0.0
    %514 = vmatprep.subr.mxu0 0.0
    %515 = vmatpush1.msra.mxu0 0.0
    %516 = vmatprep.subr.mxu0 0.0
    %517 = vmatpush1.msra.mxu0 0.0
    %518 = vmatprep.subr.mxu0 0.0
    %519 = vmatpush1.msra.mxu0 0.0
    %520 = vmatprep.subr.mxu0 0.0
    %521 = vmatpush1.msra.mxu0 0.0
    %522 = vmatprep.subr.mxu0 0.0
    %523 = vmatpush1.msra.mxu0 0.0
    %524 = vmatprep.subr.mxu0 0.0
    %525 = vmatpush1.msra.mxu0 0.0
    %526 = vmatprep.subr.mxu0 0.0
    %527 = vmatpush1.msra.mxu0 0.0
    %528 = vmatprep.subr.mxu0 0.0
    %529 = vmatpush1.msra.mxu0 0.0
    %530 = vmatprep.subr.mxu0 0.0
    %531 = vmatpush1.msra.mxu0 0.0
    %532 = vmatprep.subr.mxu0 0.0
    %533 = vmatpush1.msra.mxu0 0.0
    %534 = vmatprep.subr.mxu0 0.0
    %535 = vmatpush1.msra.mxu0 0.0
    %536 = vmatprep.subr.mxu0 0.0
    %537 = vmatpush1.msra.mxu0 0.0
    %538 = vmatprep.subr.mxu0 0.0
    %539 = vmatpush1.msra.mxu0 0.0
    %540 = vmatprep.subr.mxu0 0.0
    %541 = vmatpush1.msra.mxu0 0.0
    %542 = vmatprep.subr.mxu0 0.0
    %543 = vmatpush1.msra.mxu0 0.0
    %544 = vmatprep.subr.mxu0 0.0
    %545 = vmatpush1.msra.mxu0 0.0
    %546 = vmatprep.subr.mxu0 0.0
    %547 = vmatpush1.msra.mxu0 0.0
    %548 = vmatprep.mubr.f32.mxu0 0.0
    %v549 = vand.u32 %v68, 4294901760
    %550 = vmatmul.mubr.f32.gmra.mrb[0].mxu0 %v549
    %v551 = vpop.f32.mrb[0].mxu0
    %v552 = vadd.f32 %v477, %v551
    %v553 = vpop.f32.mrb[0].mxu0
    %554 = vdwg.mxu0
    %v555 = vld [vmem:[#allocation5] sm:$0xff]
    %v556 = vld [vmem:[#allocation5 + $0x8] sm:$0xff]
    %v557 = vld [vmem:[#allocation5 + $0x10] sm:$0xff]
    %v558 = vld [vmem:[#allocation5 + $0x18] sm:$0xff]
    %v559 = vld [vmem:[#allocation5 + $0x20] sm:$0xff]
    %v560 = vld [vmem:[#allocation5 + $0x28] sm:$0xff]
    %vm561 = vcmask 392192
    %v563 = vsel %vm561, %v61, 0
    %565 = vmatprep.subr.mxu0 0.0
    %v566 = vand.u32 %v555, 4294901760
    %567 = vmatpush1.msra.mxu0 %v566
    %568 = vmatprep.subr.mxu0 0.0
    %v569 = vand.u32 %v556, 4294901760
    %570 = vmatpush1.msra.mxu0 %v569
    %571 = vmatprep.subr.mxu0 0.0
    %v572 = vand.u32 %v557, 4294901760
    %573 = vmatpush1.msra.mxu0 %v572
    %574 = vmatprep.subr.mxu0 0.0
    %v575 = vand.u32 %v558, 4294901760
    %576 = vmatpush1.msra.mxu0 %v575
    %577 = vmatprep.subr.mxu0 0.0
    %v578 = vand.u32 %v559, 4294901760
    %579 = vmatpush1.msra.mxu0 %v578
    %580 = vmatprep.subr.mxu0 0.0
    %v581 = vand.u32 %v560, 4294901760
    %582 = vmatpush1.msra.mxu0 %v581
    %583 = vmatprep.subr.mxu0 0.0
    %584 = vmatpush1.msra.mxu0 0.0
    %585 = vmatprep.subr.mxu0 0.0
    %586 = vmatpush1.msra.mxu0 0.0
    %587 = vmatprep.subr.mxu0 0.0
    %588 = vmatpush1.msra.mxu0 0.0
    %589 = vmatprep.subr.mxu0 0.0
    %590 = vmatpush1.msra.mxu0 0.0
    %591 = vmatprep.subr.mxu0 0.0
    %592 = vmatpush1.msra.mxu0 0.0
    %593 = vmatprep.subr.mxu0 0.0
    %594 = vmatpush1.msra.mxu0 0.0
    %595 = vmatprep.subr.mxu0 0.0
    %596 = vmatpush1.msra.mxu0 0.0
    %597 = vmatprep.subr.mxu0 0.0
    %598 = vmatpush1.msra.mxu0 0.0
    %599 = vmatprep.subr.mxu0 0.0
    %600 = vmatpush1.msra.mxu0 0.0
    %601 = vmatprep.subr.mxu0 0.0
    %602 = vmatpush1.msra.mxu0 0.0
    %603 = vmatprep.subr.mxu0 0.0
    %604 = vmatpush1.msra.mxu0 0.0
    %605 = vmatprep.subr.mxu0 0.0
    %606 = vmatpush1.msra.mxu0 0.0
    %607 = vmatprep.subr.mxu0 0.0
    %608 = vmatpush1.msra.mxu0 0.0
    %609 = vmatprep.subr.mxu0 0.0
    %610 = vmatpush1.msra.mxu0 0.0
    %611 = vmatprep.subr.mxu0 0.0
    %612 = vmatpush1.msra.mxu0 0.0
    %613 = vmatprep.subr.mxu0 0.0
    %614 = vmatpush1.msra.mxu0 0.0
    %615 = vmatprep.subr.mxu0 0.0
    %616 = vmatpush1.msra.mxu0 0.0
    %617 = vmatprep.subr.mxu0 0.0
    %618 = vmatpush1.msra.mxu0 0.0
    %619 = vmatprep.subr.mxu0 0.0
    %620 = vmatpush1.msra.mxu0 0.0
    %621 = vmatprep.subr.mxu0 0.0
    %622 = vmatpush1.msra.mxu0 0.0
    %623 = vmatprep.subr.mxu0 0.0
    %624 = vmatpush1.msra.mxu0 0.0
    %625 = vmatprep.subr.mxu0 0.0
    %626 = vmatpush1.msra.mxu0 0.0
    %627 = vmatprep.subr.mxu0 0.0
    %628 = vmatpush1.msra.mxu0 0.0
    %629 = vmatprep.subr.mxu0 0.0
    %630 = vmatpush1.msra.mxu0 0.0
    %631 = vmatprep.subr.mxu0 0.0
    %632 = vmatpush1.msra.mxu0 0.0
    %633 = vmatprep.subr.mxu0 0.0
    %634 = vmatpush1.msra.mxu0 0.0
    %635 = vmatprep.mubr.f32.mxu0 0.0
    %v636 = vand.u32 %v563, 4294901760
    %v637 = vsub.f32 %v563, %v636
    %v638 = vand.u32 %v637, 4294901760
    %v639 = vsub.f32 %v637, %v638
    %v640 = vand.u32 %v639, 4294901760
    %641 = vmatmul.mubr.f32.gmra.mrb[0].mxu0 %v640
    %v642 = vpop.f32.mrb[0].mxu0
    %v643 = vadd.f32 0.0, %v642
    %v644 = vpop.f32.mrb[0].mxu0
    %645 = vdwg.mxu0
    %646 = vmatprep.subr.mxu0 0.0
    %v647 = vand.u32 %v555, 4294901760
    %v648 = vsub.f32 %v555, %v647
    %v649 = vand.u32 %v648, 4294901760
    %v650 = vsub.f32 %v648, %v649
    %v651 = vand.u32 %v650, 4294901760
    %652 = vmatpush1.msra.mxu0 %v651
    %653 = vmatprep.subr.mxu0 0.0
    %v654 = vand.u32 %v556, 4294901760
    %v655 = vsub.f32 %v556, %v654
    %v656 = vand.u32 %v655, 4294901760
    %v657 = vsub.f32 %v655, %v656
    %v658 = vand.u32 %v657, 4294901760
    %659 = vmatpush1.msra.mxu0 %v658
    %660 = vmatprep.subr.mxu0 0.0
    %v661 = vand.u32 %v557, 4294901760
    %v662 = vsub.f32 %v557, %v661
    %v663 = vand.u32 %v662, 4294901760
    %v664 = vsub.f32 %v662, %v663
    %v665 = vand.u32 %v664, 4294901760
    %666 = vmatpush1.msra.mxu0 %v665
    %667 = vmatprep.subr.mxu0 0.0
    %v668 = vand.u32 %v558, 4294901760
    %v669 = vsub.f32 %v558, %v668
    %v670 = vand.u32 %v669, 4294901760
    %v671 = vsub.f32 %v669, %v670
    %v672 = vand.u32 %v671, 4294901760
    %673 = vmatpush1.msra.mxu0 %v672
    %674 = vmatprep.subr.mxu0 0.0
    %v675 = vand.u32 %v559, 4294901760
    %v676 = vsub.f32 %v559, %v675
    %v677 = vand.u32 %v676, 4294901760
    %v678 = vsub.f32 %v676, %v677
    %v679 = vand.u32 %v678, 4294901760
    %680 = vmatpush1.msra.mxu0 %v679
    %681 = vmatprep.subr.mxu0 0.0
    %v682 = vand.u32 %v560, 4294901760
    %v683 = vsub.f32 %v560, %v682
    %v684 = vand.u32 %v683, 4294901760
    %v685 = vsub.f32 %v683, %v684
    %v686 = vand.u32 %v685, 4294901760
    %687 = vmatpush1.msra.mxu0 %v686
    %688 = vmatprep.subr.mxu0 0.0
    %689 = vmatpush1.msra.mxu0 0.0
    %690 = vmatprep.subr.mxu0 0.0
    %691 = vmatpush1.msra.mxu0 0.0
    %692 = vmatprep.subr.mxu0 0.0
    %693 = vmatpush1.msra.mxu0 0.0
    %694 = vmatprep.subr.mxu0 0.0
    %695 = vmatpush1.msra.mxu0 0.0
    %696 = vmatprep.subr.mxu0 0.0
    %697 = vmatpush1.msra.mxu0 0.0
    %698 = vmatprep.subr.mxu0 0.0
    %699 = vmatpush1.msra.mxu0 0.0
    %700 = vmatprep.subr.mxu0 0.0
    %701 = vmatpush1.msra.mxu0 0.0
    %702 = vmatprep.subr.mxu0 0.0
    %703 = vmatpush1.msra.mxu0 0.0
    %704 = vmatprep.subr.mxu0 0.0
    %705 = vmatpush1.msra.mxu0 0.0
    %706 = vmatprep.subr.mxu0 0.0
    %707 = vmatpush1.msra.mxu0 0.0
    %708 = vmatprep.subr.mxu0 0.0
    %709 = vmatpush1.msra.mxu0 0.0
    %710 = vmatprep.subr.mxu0 0.0
    %711 = vmatpush1.msra.mxu0 0.0
    %712 = vmatprep.subr.mxu0 0.0
    %713 = vmatpush1.msra.mxu0 0.0
    %714 = vmatprep.subr.mxu0 0.0
    %715 = vmatpush1.msra.mxu0 0.0
    %716 = vmatprep.subr.mxu0 0.0
    %717 = vmatpush1.msra.mxu0 0.0
    %718 = vmatprep.subr.mxu0 0.0
    %719 = vmatpush1.msra.mxu0 0.0
    %720 = vmatprep.subr.mxu0 0.0
    %721 = vmatpush1.msra.mxu0 0.0
    %722 = vmatprep.subr.mxu0 0.0
    %723 = vmatpush1.msra.mxu0 0.0
    %724 = vmatprep.subr.mxu0 0.0
    %725 = vmatpush1.msra.mxu0 0.0
    %726 = vmatprep.subr.mxu0 0.0
    %727 = vmatpush1.msra.mxu0 0.0
    %728 = vmatprep.subr.mxu0 0.0
    %729 = vmatpush1.msra.mxu0 0.0
    %730 = vmatprep.subr.mxu0 0.0
    %731 = vmatpush1.msra.mxu0 0.0
    %732 = vmatprep.subr.mxu0 0.0
    %733 = vmatpush1.msra.mxu0 0.0
    %734 = vmatprep.subr.mxu0 0.0
    %735 = vmatpush1.msra.mxu0 0.0
    %736 = vmatprep.subr.mxu0 0.0
    %737 = vmatpush1.msra.mxu0 0.0
    %738 = vmatprep.subr.mxu0 0.0
    %739 = vmatpush1.msra.mxu0 0.0
    %740 = vmatprep.mubr.f32.mxu0 0.0
    %v741 = vand.u32 %v563, 4294901760
    %742 = vmatmul.mubr.f32.gmra.mrb[0].mxu0 %v741
    %v743 = vpop.f32.mrb[0].mxu0
    %v744 = vadd.f32 %v643, %v743
    %v745 = vpop.f32.mrb[0].mxu0
    %746 = vdwg.mxu0
    %747 = vmatprep.subr.mxu0 0.0
    %v748 = vand.u32 %v555, 4294901760
    %v749 = vsub.f32 %v555, %v748
    %750 = vmatpush1.msra.mxu0 %v749
    %751 = vmatprep.subr.mxu0 0.0
    %v752 = vand.u32 %v556, 4294901760
    %v753 = vsub.f32 %v556, %v752
    %754 = vmatpush1.msra.mxu0 %v753
    %755 = vmatprep.subr.mxu0 0.0
    %v756 = vand.u32 %v557, 4294901760
    %v757 = vsub.f32 %v557, %v756
    %758 = vmatpush1.msra.mxu0 %v757
    %759 = vmatprep.subr.mxu0 0.0
    %v760 = vand.u32 %v558, 4294901760
    %v761 = vsub.f32 %v558, %v760
    %762 = vmatpush1.msra.mxu0 %v761
    %763 = vmatprep.subr.mxu0 0.0
    %v764 = vand.u32 %v559, 4294901760
    %v765 = vsub.f32 %v559, %v764
    %766 = vmatpush1.msra.mxu0 %v765
    %767 = vmatprep.subr.mxu0 0.0
    %v768 = vand.u32 %v560, 4294901760
    %v769 = vsub.f32 %v560, %v768
    %770 = vmatpush1.msra.mxu0 %v769
    %771 = vmatprep.subr.mxu0 0.0
    %772 = vmatpush1.msra.mxu0 0.0
    %773 = vmatprep.subr.mxu0 0.0
    %774 = vmatpush1.msra.mxu0 0.0
    %775 = vmatprep.subr.mxu0 0.0
    %776 = vmatpush1.msra.mxu0 0.0
    %777 = vmatprep.subr.mxu0 0.0
    %778 = vmatpush1.msra.mxu0 0.0
    %779 = vmatprep.subr.mxu0 0.0
    %780 = vmatpush1.msra.mxu0 0.0
    %781 = vmatprep.subr.mxu0 0.0
    %782 = vmatpush1.msra.mxu0 0.0
    %783 = vmatprep.subr.mxu0 0.0
    %784 = vmatpush1.msra.mxu0 0.0
    %785 = vmatprep.subr.mxu0 0.0
    %786 = vmatpush1.msra.mxu0 0.0
    %787 = vmatprep.subr.mxu0 0.0
    %788 = vmatpush1.msra.mxu0 0.0
    %789 = vmatprep.subr.mxu0 0.0
    %790 = vmatpush1.msra.mxu0 0.0
    %791 = vmatprep.subr.mxu0 0.0
    %792 = vmatpush1.msra.mxu0 0.0
    %793 = vmatprep.subr.mxu0 0.0
    %794 = vmatpush1.msra.mxu0 0.0
    %795 = vmatprep.subr.mxu0 0.0
    %796 = vmatpush1.msra.mxu0 0.0
    %797 = vmatprep.subr.mxu0 0.0
    %798 = vmatpush1.msra.mxu0 0.0
    %799 = vmatprep.subr.mxu0 0.0
    %800 = vmatpush1.msra.mxu0 0.0
    %801 = vmatprep.subr.mxu0 0.0
    %802 = vmatpush1.msra.mxu0 0.0
    %803 = vmatprep.subr.mxu0 0.0
    %804 = vmatpush1.msra.mxu0 0.0
    %805 = vmatprep.subr.mxu0 0.0
    %806 = vmatpush1.msra.mxu0 0.0
    %807 = vmatprep.subr.mxu0 0.0
    %808 = vmatpush1.msra.mxu0 0.0
    %809 = vmatprep.subr.mxu0 0.0
    %810 = vmatpush1.msra.mxu0 0.0
    %811 = vmatprep.subr.mxu0 0.0
    %812 = vmatpush1.msra.mxu0 0.0
    %813 = vmatprep.subr.mxu0 0.0
    %814 = vmatpush1.msra.mxu0 0.0
    %815 = vmatprep.subr.mxu0 0.0
    %816 = vmatpush1.msra.mxu0 0.0
    %817 = vmatprep.subr.mxu0 0.0
    %818 = vmatpush1.msra.mxu0 0.0
    %819 = vmatprep.subr.mxu0 0.0
    %820 = vmatpush1.msra.mxu0 0.0
    %821 = vmatprep.subr.mxu0 0.0
    %822 = vmatpush1.msra.mxu0 0.0
    %823 = vmatprep.mubr.f32.mxu0 0.0
    %v824 = vand.u32 %v563, 4294901760
    %v825 = vsub.f32 %v563, %v824
    %826 = vmatmul.mubr.f32.gmra.mrb[0].mxu0 %v825
    %v827 = vpop.f32.mrb[0].mxu0
    %v828 = vadd.f32 %v744, %v827
    %v829 = vpop.f32.mrb[0].mxu0
    %830 = vdwg.mxu0
    %831 = vmatprep.subr.mxu0 0.0
    %v832 = vand.u32 %v555, 4294901760
    %833 = vmatpush1.msra.mxu0 %v832
    %834 = vmatprep.subr.mxu0 0.0
    %v835 = vand.u32 %v556, 4294901760
    %836 = vmatpush1.msra.mxu0 %v835
    %837 = vmatprep.subr.mxu0 0.0
    %v838 = vand.u32 %v557, 4294901760
    %839 = vmatpush1.msra.mxu0 %v838
    %840 = vmatprep.subr.mxu0 0.0
    %v841 = vand.u32 %v558, 4294901760
    %842 = vmatpush1.msra.mxu0 %v841
    %843 = vmatprep.subr.mxu0 0.0
    %v844 = vand.u32 %v559, 4294901760
    %845 = vmatpush1.msra.mxu0 %v844
    %846 = vmatprep.subr.mxu0 0.0
    %v847 = vand.u32 %v560, 4294901760
    %848 = vmatpush1.msra.mxu0 %v847
    %849 = vmatprep.subr.mxu0 0.0
    %850 = vmatpush1.msra.mxu0 0.0
    %851 = vmatprep.subr.mxu0 0.0
    %852 = vmatpush1.msra.mxu0 0.0
    %853 = vmatprep.subr.mxu0 0.0
    %854 = vmatpush1.msra.mxu0 0.0
    %855 = vmatprep.subr.mxu0 0.0
    %856 = vmatpush1.msra.mxu0 0.0
    %857 = vmatprep.subr.mxu0 0.0
    %858 = vmatpush1.msra.mxu0 0.0
    %859 = vmatprep.subr.mxu0 0.0
    %860 = vmatpush1.msra.mxu0 0.0
    %861 = vmatprep.subr.mxu0 0.0
    %862 = vmatpush1.msra.mxu0 0.0
    %863 = vmatprep.subr.mxu0 0.0
    %864 = vmatpush1.msra.mxu0 0.0
    %865 = vmatprep.subr.mxu0 0.0
    %866 = vmatpush1.msra.mxu0 0.0
    %867 = vmatprep.subr.mxu0 0.0
    %868 = vmatpush1.msra.mxu0 0.0
    %869 = vmatprep.subr.mxu0 0.0
    %870 = vmatpush1.msra.mxu0 0.0
    %871 = vmatprep.subr.mxu0 0.0
    %872 = vmatpush1.msra.mxu0 0.0
    %873 = vmatprep.subr.mxu0 0.0
    %874 = vmatpush1.msra.mxu0 0.0
    %875 = vmatprep.subr.mxu0 0.0
    %876 = vmatpush1.msra.mxu0 0.0
    %877 = vmatprep.subr.mxu0 0.0
    %878 = vmatpush1.msra.mxu0 0.0
    %879 = vmatprep.subr.mxu0 0.0
    %880 = vmatpush1.msra.mxu0 0.0
    %881 = vmatprep.subr.mxu0 0.0
    %882 = vmatpush1.msra.mxu0 0.0
    %883 = vmatprep.subr.mxu0 0.0
    %884 = vmatpush1.msra.mxu0 0.0
    %885 = vmatprep.subr.mxu0 0.0
    %886 = vmatpush1.msra.mxu0 0.0
    %887 = vmatprep.subr.mxu0 0.0
    %888 = vmatpush1.msra.mxu0 0.0
    %889 = vmatprep.subr.mxu0 0.0
    %890 = vmatpush1.msra.mxu0 0.0
    %891 = vmatprep.subr.mxu0 0.0
    %892 = vmatpush1.msra.mxu0 0.0
    %893 = vmatprep.subr.mxu0 0.0
    %894 = vmatpush1.msra.mxu0 0.0
    %895 = vmatprep.subr.mxu0 0.0
    %896 = vmatpush1.msra.mxu0 0.0
    %897 = vmatprep.subr.mxu0 0.0
    %898 = vmatpush1.msra.mxu0 0.0
    %899 = vmatprep.subr.mxu0 0.0
    %900 = vmatpush1.msra.mxu0 0.0
    %901 = vmatprep.mubr.f32.mxu0 0.0
    %v902 = vand.u32 %v563, 4294901760
    %v903 = vsub.f32 %v563, %v902
    %v904 = vand.u32 %v903, 4294901760
    %905 = vmatmul.mubr.f32.gmra.mrb[0].mxu0 %v904
    %v906 = vpop.f32.mrb[0].mxu0
    %v907 = vadd.f32 %v828, %v906
    %v908 = vpop.f32.mrb[0].mxu0
    %909 = vdwg.mxu0
    %910 = vmatprep.subr.mxu0 0.0
    %v911 = vand.u32 %v555, 4294901760
    %v912 = vsub.f32 %v555, %v911
    %v913 = vand.u32 %v912, 4294901760
    %914 = vmatpush1.msra.mxu0 %v913
    %915 = vmatprep.subr.mxu0 0.0
    %v916 = vand.u32 %v556, 4294901760
    %v917 = vsub.f32 %v556, %v916
    %v918 = vand.u32 %v917, 4294901760
    %919 = vmatpush1.msra.mxu0 %v918
    %920 = vmatprep.subr.mxu0 0.0
    %v921 = vand.u32 %v557, 4294901760
    %v922 = vsub.f32 %v557, %v921
    %v923 = vand.u32 %v922, 4294901760
    %924 = vmatpush1.msra.mxu0 %v923
    %925 = vmatprep.subr.mxu0 0.0
    %v926 = vand.u32 %v558, 4294901760
    %v927 = vsub.f32 %v558, %v926
    %v928 = vand.u32 %v927, 4294901760
    %929 = vmatpush1.msra.mxu0 %v928
    %930 = vmatprep.subr.mxu0 0.0
    %v931 = vand.u32 %v559, 4294901760
    %v932 = vsub.f32 %v559, %v931
    %v933 = vand.u32 %v932, 4294901760
    %934 = vmatpush1.msra.mxu0 %v933
    %935 = vmatprep.subr.mxu0 0.0
    %v936 = vand.u32 %v560, 4294901760
    %v937 = vsub.f32 %v560, %v936
    %v938 = vand.u32 %v937, 4294901760
    %939 = vmatpush1.msra.mxu0 %v938
    %940 = vmatprep.subr.mxu0 0.0
    %941 = vmatpush1.msra.mxu0 0.0
    %942 = vmatprep.subr.mxu0 0.0
    %943 = vmatpush1.msra.mxu0 0.0
    %944 = vmatprep.subr.mxu0 0.0
    %945 = vmatpush1.msra.mxu0 0.0
    %946 = vmatprep.subr.mxu0 0.0
    %947 = vmatpush1.msra.mxu0 0.0
    %948 = vmatprep.subr.mxu0 0.0
    %949 = vmatpush1.msra.mxu0 0.0
    %950 = vmatprep.subr.mxu0 0.0
    %951 = vmatpush1.msra.mxu0 0.0
    %952 = vmatprep.subr.mxu0 0.0
    %953 = vmatpush1.msra.mxu0 0.0
    %954 = vmatprep.subr.mxu0 0.0
    %955 = vmatpush1.msra.mxu0 0.0
    %956 = vmatprep.subr.mxu0 0.0
    %957 = vmatpush1.msra.mxu0 0.0
    %958 = vmatprep.subr.mxu0 0.0
    %959 = vmatpush1.msra.mxu0 0.0
    %960 = vmatprep.subr.mxu0 0.0
    %961 = vmatpush1.msra.mxu0 0.0
    %962 = vmatprep.subr.mxu0 0.0
    %963 = vmatpush1.msra.mxu0 0.0
    %964 = vmatprep.subr.mxu0 0.0
    %965 = vmatpush1.msra.mxu0 0.0
    %966 = vmatprep.subr.mxu0 0.0
    %967 = vmatpush1.msra.mxu0 0.0
    %968 = vmatprep.subr.mxu0 0.0
    %969 = vmatpush1.msra.mxu0 0.0
    %970 = vmatprep.subr.mxu0 0.0
    %971 = vmatpush1.msra.mxu0 0.0
    %972 = vmatprep.subr.mxu0 0.0
    %973 = vmatpush1.msra.mxu0 0.0
    %974 = vmatprep.subr.mxu0 0.0
    %975 = vmatpush1.msra.mxu0 0.0
    %976 = vmatprep.subr.mxu0 0.0
    %977 = vmatpush1.msra.mxu0 0.0
    %978 = vmatprep.subr.mxu0 0.0
    %979 = vmatpush1.msra.mxu0 0.0
    %980 = vmatprep.subr.mxu0 0.0
    %981 = vmatpush1.msra.mxu0 0.0
    %982 = vmatprep.subr.mxu0 0.0
    %983 = vmatpush1.msra.mxu0 0.0
    %984 = vmatprep.subr.mxu0 0.0
    %985 = vmatpush1.msra.mxu0 0.0
    %986 = vmatprep.subr.mxu0 0.0
    %987 = vmatpush1.msra.mxu0 0.0
    %988 = vmatprep.subr.mxu0 0.0
    %989 = vmatpush1.msra.mxu0 0.0
    %990 = vmatprep.subr.mxu0 0.0
    %991 = vmatpush1.msra.mxu0 0.0
    %992 = vmatprep.mubr.f32.mxu0 0.0
    %v993 = vand.u32 %v563, 4294901760
    %994 = vmatmul.mubr.f32.gmra.mrb[0].mxu0 %v993
    %v995 = vpop.f32.mrb[0].mxu0
    %v996 = vadd.f32 %v907, %v995
    %v997 = vpop.f32.mrb[0].mxu0
    %998 = vdwg.mxu0
    %999 = vmatprep.subr.mxu0 0.0
    %v1000 = vand.u32 %v555, 4294901760
    %1001 = vmatpush1.msra.mxu0 %v1000
    %1002 = vmatprep.subr.mxu0 0.0
    %v1003 = vand.u32 %v556, 4294901760
    %1004 = vmatpush1.msra.mxu0 %v1003
    %1005 = vmatprep.subr.mxu0 0.0
    %v1006 = vand.u32 %v557, 4294901760
    %1007 = vmatpush1.msra.mxu0 %v1006
    %1008 = vmatprep.subr.mxu0 0.0
    %v1009 = vand.u32 %v558, 4294901760
    %1010 = vmatpush1.msra.mxu0 %v1009
    %1011 = vmatprep.subr.mxu0 0.0
    %v1012 = vand.u32 %v559, 4294901760
    %1013 = vmatpush1.msra.mxu0 %v1012
    %1014 = vmatprep.subr.mxu0 0.0
    %v1015 = vand.u32 %v560, 4294901760
    %1016 = vmatpush1.msra.mxu0 %v1015
    %1017 = vmatprep.subr.mxu0 0.0
    %1018 = vmatpush1.msra.mxu0 0.0
    %1019 = vmatprep.subr.mxu0 0.0
    %1020 = vmatpush1.msra.mxu0 0.0
    %1021 = vmatprep.subr.mxu0 0.0
    %1022 = vmatpush1.msra.mxu0 0.0
    %1023 = vmatprep.subr.mxu0 0.0
    %1024 = vmatpush1.msra.mxu0 0.0
    %1025 = vmatprep.subr.mxu0 0.0
    %1026 = vmatpush1.msra.mxu0 0.0
    %1027 = vmatprep.subr.mxu0 0.0
    %1028 = vmatpush1.msra.mxu0 0.0
    %1029 = vmatprep.subr.mxu0 0.0
    %1030 = vmatpush1.msra.mxu0 0.0
    %1031 = vmatprep.subr.mxu0 0.0
    %1032 = vmatpush1.msra.mxu0 0.0
    %1033 = vmatprep.subr.mxu0 0.0
    %1034 = vmatpush1.msra.mxu0 0.0
    %1035 = vmatprep.subr.mxu0 0.0
    %1036 = vmatpush1.msra.mxu0 0.0
    %1037 = vmatprep.subr.mxu0 0.0
    %1038 = vmatpush1.msra.mxu0 0.0
    %1039 = vmatprep.subr.mxu0 0.0
    %1040 = vmatpush1.msra.mxu0 0.0
    %1041 = vmatprep.subr.mxu0 0.0
    %1042 = vmatpush1.msra.mxu0 0.0
    %1043 = vmatprep.subr.mxu0 0.0
    %1044 = vmatpush1.msra.mxu0 0.0
    %1045 = vmatprep.subr.mxu0 0.0
    %1046 = vmatpush1.msra.mxu0 0.0
    %1047 = vmatprep.subr.mxu0 0.0
    %1048 = vmatpush1.msra.mxu0 0.0
    %1049 = vmatprep.subr.mxu0 0.0
    %1050 = vmatpush1.msra.mxu0 0.0
    %1051 = vmatprep.subr.mxu0 0.0
    %1052 = vmatpush1.msra.mxu0 0.0
    %1053 = vmatprep.subr.mxu0 0.0
    %1054 = vmatpush1.msra.mxu0 0.0
    %1055 = vmatprep.subr.mxu0 0.0
    %1056 = vmatpush1.msra.mxu0 0.0
    %1057 = vmatprep.subr.mxu0 0.0
    %1058 = vmatpush1.msra.mxu0 0.0
    %1059 = vmatprep.subr.mxu0 0.0
    %1060 = vmatpush1.msra.mxu0 0.0
    %1061 = vmatprep.subr.mxu0 0.0
    %1062 = vmatpush1.msra.mxu0 0.0
    %1063 = vmatprep.subr.mxu0 0.0
    %1064 = vmatpush1.msra.mxu0 0.0
    %1065 = vmatprep.subr.mxu0 0.0
    %1066 = vmatpush1.msra.mxu0 0.0
    %1067 = vmatprep.subr.mxu0 0.0
    %1068 = vmatpush1.msra.mxu0 0.0
    %1069 = vmatprep.mubr.f32.mxu0 0.0
    %v1070 = vand.u32 %v563, 4294901760
    %1071 = vmatmul.mubr.f32.gmra.mrb[0].mxu0 %v1070
    %v1072 = vpop.f32.mrb[0].mxu0
    %v1073 = vadd.f32 %v996, %v1072
    %v1074 = vpop.f32.mrb[0].mxu0
    %1075 = vdwg.mxu0
    %v1076 = vmul.f32 %v552, %v1073
    %vm1077 = vcmask 523264
    %1078 = vst.msk [vmem:[#allocation7] sm:$0xff] %vm1077, %v1076
    // Predicated region
    $region26: #{tpu_custom_call.1} parent=1 // pred_check
      _
    $region27: #{tpu_custom_call.1} parent=1 // pred_check_branch
      %1080 = sbr.rel (0) target = $region29
    $region28: #{tpu_custom_call.1} parent=1 // pred_region
      %s1082 = ssub.s32 128, 128
      %1083 = vsyncadd [#allocation4], %s1082
      %s1085 = sshll.u32 [#allocation7], 4
      %s1086 = int_to_ptr.vmem [resolvable:$true] %s1085
      %1088 = dma.vmem_to_hbm [thread:$0]  %s1086, 128, %s4, [#allocation4]
    $region29: #{tpu_custom_call.1} parent=1 // pred_fallthru
      _
    // Predicated region
    $region30: #{tpu_custom_call.1} parent=1 // pred_check
      _
    $region31: #{tpu_custom_call.1} parent=1 // pred_check_branch
      %1090 = sbr.rel (0) target = $region33
    $region32: #{tpu_custom_call.1} parent=1 // pred_region
      %1091 = dma.done [#allocation4], 128
    $region33: #{tpu_custom_call.1} parent=1 // pred_fallthru
      _
    %1092 = vsyncpa [#allocation3], 1
    %1093 = vsyncpa [#allocation6], 1
    %1094 = vsyncpa [#allocation4], 1

</llo_original>
